<compile_context>
chip_gen: v6e
topology: v6e:2x2x1
jax: 0.10.0
libtpu: 0.0.40
codegen_flags: <defaults>
</compile_context>

<pallas_src>
import functools

import jax
import jax.numpy as jnp
from jax.experimental import pallas as pl
from jax.experimental.pallas import tpu as pltpu

_LANE = 128
_SUBLANE = 8
# (tile_n, 1)-shaped scratch / target buffers pad their lane dim to 128 in
# VMEM: budget ~4 KiB per row for them (3 f32 scratch + double-buffered i32
# targets + slack).
_ROW_OVERHEAD_BYTES = 4096


def _vmem_limit_bytes() -> int:
    """Generation-aware scoped-VMEM request.

    v7x (64 MiB physical per TC) -> ~48 MiB; v5e/v6e (128 MiB) -> 96 MiB.
    Falls back to the conservative v7x figure if the query is unavailable.
    """
    cap = 64 * 1024 * 1024
    try:
        cap = int(pltpu.get_tpu_info().vmem_capacity_bytes)
    except Exception:
        pass
    return min(cap * 3 // 4, 112 * 1024 * 1024)


def _choose_tiles(n: int, c: int, itemsize: int, vmem_limit: int):
    """Pick (tile_n, tile_c).

    Per block element we budget: 2 x native dtype (double-buffered logits DMA)
    + ~3 x f32 (in-kernel upcast / exp / select temporaries), plus a fixed
    per-row overhead for the lane-padded (tile_n, 1) scratch and target
    buffers.  The whole block is kept at ~60% of the scoped VMEM limit so the
    compiler has headroom and nothing spills.
    """
    pack = 8 * max(1, 4 // itemsize)          # sublane packing: 8 f32, 16 bf16
    per_elem = 2 * itemsize + 3 * 4
    budget = (vmem_limit * 6) // 10

    # Class axis: keep all of C in one block if `pack` rows of it fit the
    # budget, otherwise tile C in multiples of 128 lanes (online-LSE path).
    if pack * (c * per_elem + _ROW_OVERHEAD_BYTES) <= budget:
        tile_c = c
    else:
        lane_budget = max(_LANE, (budget // pack - _ROW_OVERHEAD_BYTES) // per_elem)
        tile_c = max(_LANE, (lane_budget // _LANE) * _LANE)
        tile_c = min(tile_c, pl.cdiv(c, _LANE) * _LANE)

    # Batch axis: as many rows as fit the budget (a multiple of the packing
    # granularity, or the full batch).
    row_bytes = tile_c * per_elem + _ROW_OVERHEAD_BYTES
    tile_n = max(pack, (budget // row_bytes) // pack * pack)
    if tile_n >= n:
        tile_n = n
        # v7x megacore: if one tile would cover the whole batch, split it so
        # both TensorCores get work (grid axis 0 is "parallel").
        if n >= 2 * pack:
            half = pl.cdiv(pl.cdiv(n, 2), pack) * pack
            if half < n:
                tile_n = half
    return tile_n, tile_c


def _cross_entropy_kernel(logits_ref, tgt_ref, out_ref, m_sc, l_sc, t_sc, *,
                          n_total: int, c_total: int, tile_n: int, tile_c: int,
                          ragged_n: bool, ragged_c: bool):
    """One (row-tile, class-tile) step of an online-softmax cross entropy.

    Scratch (per row): m_sc running max, l_sc running sum of exp, t_sc target
    logit.  The per-row-tile partial NLL sum is emitted as a lane-dense
    (8,128) f32 block on the last class step.
    """
    i = pl.program_id(0)
    k = pl.program_id(1)
    nk = pl.num_programs(1)

    @pl.when(k == 0)
    def _():
        m_sc[...] = jnp.full(m_sc.shape, -jnp.inf, dtype=jnp.float32)
        l_sc[...] = jnp.zeros(l_sc.shape, dtype=jnp.float32)
        t_sc[...] = jnp.zeros(t_sc.shape, dtype=jnp.float32)

    chunk = logits_ref[...]                      # (tile_n, tile_c) native dtype
    tgt = tgt_ref[...]                           # (tile_n, 1) int32

    # (1, tile_c) class indices for this class tile; broadcast into compares.
    lane_idx = k * tile_c + jax.lax.broadcasted_iota(jnp.int32, (1, tile_c), 1)

    if ragged_c:
        # Mask lanes past C (ragged last class tile) out of max / sum-exp.
        chunk = jnp.where(lane_idx < c_total, chunk,
                          jnp.array(-jnp.inf, dtype=chunk.dtype))

    # Single in-register upcast; reused by the max, exp and gather passes.
    chunk_f32 = chunk.astype(jnp.float32)

    # --- online log-sum-exp update (f32 accumulators) ---
    cmax = jnp.max(chunk_f32, axis=-1, keepdims=True)          # (tile_n, 1)
    m_new = jnp.maximum(m_sc[...], cmax)
    alpha = jnp.exp(m_sc[...] - m_new)
    p = jnp.exp(chunk_f32 - m_new)                              # (tile_n, tile_c)
    l_sc[...] = l_sc[...] * alpha + jnp.sum(p, axis=-1, keepdims=True)
    m_sc[...] = m_new

    # --- target-logit gather: one compare + select + reduce per class tile ---
    # TODO(synk): ignore_index (-100) semantics of torch CrossEntropyLoss are
    # not implemented; all rows are assumed to hold valid class indices.
    eq = lane_idx == tgt                                        # (tile_n, tile_c)
    t_sc[...] += jnp.sum(jnp.where(eq, chunk_f32, 0.0), axis=-1, keepdims=True)

    @pl.when(k == nk - 1)
    def _():
        lse = m_sc[...] + jnp.log(l_sc[...])                    # (tile_n, 1)
        per_sample = lse - t_sc[...]
        if ragged_n:
            row_ids = i * tile_n + jax.lax.broadcasted_iota(
                jnp.int32, (tile_n, 1), 0)
            per_sample = jnp.where(row_ids < n_total, per_sample, 0.0)
        # Lane-dense, unmasked store of this row tile's partial NLL sum.
        out_ref[...] = jnp.full(out_ref.shape, jnp.sum(per_sample),
                                dtype=jnp.float32)


def cross_entropy_loss(logits: jax.Array, targets: jax.Array,
                       weight: float = 1.0,
                       tile_n: int | None = None,
                       tile_c: int | None = None) -> jax.Array:
    """Equivalent of CrossEntropy(weight).forward(logits, targets).

    logits:  (N, C) float (f32 or bf16)
    targets: (N,)   int class indices in [0, C)
    returns: scalar float32 loss = mean(CE) * weight

    TODO(synk): torch's CrossEntropyLoss `weight` argument is a per-class
    tensor; here `weight` is the module's scalar post-scale (as in the spec).
    """
    n, c = logits.shape
    itemsize = jnp.dtype(logits.dtype).itemsize
    vmem_limit = _vmem_limit_bytes()
    auto_n, auto_c = _choose_tiles(n, c, itemsize, vmem_limit)
    if tile_n is None:
        tile_n = auto_n
    if tile_c is None:
        tile_c = auto_c

    num_row_tiles = pl.cdiv(n, tile_n)
    num_c_tiles = pl.cdiv(c, tile_c)
    ragged_n = (n % tile_n) != 0
    ragged_c = (tile_c != c) and ((c % tile_c) != 0)

    tgt2d = targets.astype(jnp.int32).reshape(n, 1)

    kernel = functools.partial(
        _cross_entropy_kernel, n_total=n, c_total=c,
        tile_n=tile_n, tile_c=tile_c, ragged_n=ragged_n, ragged_c=ragged_c)

    out_bytes = num_row_tiles * _SUBLANE * _LANE * 4
    cost = pl.CostEstimate(
        flops=6 * n * c,
        transcendentals=n * c,
        bytes_accessed=n * c * itemsize + n * 4 * num_c_tiles + out_bytes,
    )

    partials = pl.pallas_call(
        kernel,
        out_shape=jax.ShapeDtypeStruct((num_row_tiles, _SUBLANE, _LANE),
                                       jnp.float32),
        grid_spec=pltpu.PrefetchScalarGridSpec(
            num_scalar_prefetch=0,
            grid=(num_row_tiles, num_c_tiles),
            in_specs=[
                # logits stream in their native dtype (bf16 halves DMA bytes);
                # default double-buffering is already DMA-bound on v5e.
                pl.BlockSpec((tile_n, tile_c), lambda i, k: (i, k)),
                pl.BlockSpec((tile_n, 1), lambda i, k: (i, 0)),
            ],
            out_specs=pl.BlockSpec((1, _SUBLANE, _LANE), lambda i, k: (i, 0, 0)),
            scratch_shapes=[
                pltpu.VMEM((tile_n, 1), jnp.float32),   # running max  m
                pltpu.VMEM((tile_n, 1), jnp.float32),   # running sum  l
                pltpu.VMEM((tile_n, 1), jnp.float32),   # target logit
            ],
        ),
        compiler_params=pltpu.CompilerParams(
            dimension_semantics=("parallel", "arbitrary"),
            vmem_limit_bytes=vmem_limit,
        ),
        cost_estimate=cost,
    )(logits, tgt2d)

    total = jnp.sum(partials[:, 0, 0])
    return total * (jnp.float32(weight) / jnp.float32(n))


def _reference_loss(logits, targets, weight):
    # pure-JAX reference (== torch.nn.CrossEntropyLoss() * weight)
    logits = logits.astype(jnp.float32)
    lse = jax.scipy.special.logsumexp(logits, axis=-1)
    tgt_logit = jnp.take_along_axis(logits, targets[:, None], axis=-1)[:, 0]
    return jnp.mean(lse - tgt_logit) * weight


if __name__ == "__main__":
    key = jax.random.PRNGKey(0)
    k1, k2, k3, k4, k5, k6, k7, k8 = jax.random.split(key, 8)

    # Case 1: small batch, whole problem in one block (auto tiling).
    N, C, WEIGHT = 8, 32, 2.5
    logits = jax.random.normal(k1, (N, C), dtype=jnp.float32)
    targets = jax.random.randint(k2, (N,), 0, C, dtype=jnp.int32)
    loss = jax.block_until_ready(cross_entropy_loss(logits, targets, weight=WEIGHT))
    ref = _reference_loss(logits, targets, WEIGHT)
    assert jnp.allclose(loss, ref, rtol=1e-5, atol=1e-5), (loss, ref)

    # Case 2: multi row-tile grid with a ragged last row tile.
    N2, C2 = 20, 128
    logits2 = jax.random.normal(k3, (N2, C2), dtype=jnp.float32)
    targets2 = jax.random.randint(k4, (N2,), 0, C2, dtype=jnp.int32)
    loss2 = jax.block_until_ready(
        cross_entropy_loss(logits2, targets2, weight=1.0, tile_n=8))
    ref2 = _reference_loss(logits2, targets2, 1.0)
    assert jnp.allclose(loss2, ref2, rtol=1e-5, atol=1e-5), (loss2, ref2)

    # Case 3: bf16 logits with the class axis tiled -> online-LSE path,
    # packed-sublane (16) row tiles, multiple row tiles on the parallel axis.
    N3, C3 = 32, 384
    logits3 = jax.random.normal(k5, (N3, C3), dtype=jnp.float32).astype(jnp.bfloat16)
    targets3 = jax.random.randint(k6, (N3,), 0, C3, dtype=jnp.int32)
    loss3 = jax.block_until_ready(
        cross_entropy_loss(logits3, targets3, weight=0.5, tile_n=16, tile_c=128))
    ref3 = _reference_loss(logits3, targets3, 0.5)
    assert jnp.allclose(loss3, ref3, rtol=1e-3, atol=1e-3), (loss3, ref3)

    # Case 4: ragged on both axes (rows 12 % 8 != 0, classes 200 % 128 != 0).
    N4, C4 = 12, 200
    logits4 = jax.random.normal(k7, (N4, C4), dtype=jnp.float32)
    targets4 = jax.random.randint(k8, (N4,), 0, C4, dtype=jnp.int32)
    loss4 = jax.block_until_ready(
        cross_entropy_loss(logits4, targets4, weight=1.0, tile_n=8, tile_c=128))
    ref4 = _reference_loss(logits4, targets4, 1.0)
    assert jnp.allclose(loss4, ref4, rtol=1e-5, atol=1e-5), (loss4, ref4)

    print("KERNEL_OK")
</pallas_src>

<mosaic_0001>
module attributes {stable_mosaic.version = 11 : i64} {
  func.func @_cross_entropy_kernel(%arg0: i32, %arg1: i32, %arg2: memref<8x32xf32, #tpu.memory_space<vmem>>, %arg3: memref<8x1xi32, #tpu.memory_space<vmem>>, %arg4: memref<1x8x128xf32, #tpu.memory_space<vmem>>, %arg5: memref<8x1xf32, #tpu.memory_space<vmem>>, %arg6: memref<8x1xf32, #tpu.memory_space<vmem>>, %arg7: memref<8x1xf32, #tpu.memory_space<vmem>>) attributes {dimension_semantics = [#tpu.dimension_semantics<parallel>, #tpu.dimension_semantics<arbitrary>], iteration_bounds = array<i64: 1, 1>, scalar_prefetch = 0 : i64, scratch_operands = 3 : i64, tpu.core_type = #tpu.core_type<tc>, window_params = [{transform_indices = @transform_0, window_bounds = array<i64: 8, 32>}, {transform_indices = @transform_1, window_bounds = array<i64: 8, 1>}, {transform_indices = @transform_2, window_bounds = array<i64: 1, 8, 128>}]} {
    %c0_i32 = arith.constant 0 : i32
    %0 = arith.cmpi eq, %arg1, %c0_i32 : i32
    %1 = arith.extui %0 : i1 to i32
    %c0_i32_0 = arith.constant 0 : i32
    %2 = arith.cmpi ne, %1, %c0_i32_0 : i32
    scf.if %2 {
      %cst_23 = arith.constant 0xFF800000 : f32
      %39 = vector.broadcast %cst_23 : f32 to vector<8x1xf32>
      %c0_24 = arith.constant 0 : index
      %c0_25 = arith.constant 0 : index
      %40 = vector.load %arg5[%c0_24, %c0_25] : memref<8x1xf32, #tpu.memory_space<vmem>>, vector<8x1xf32>
      tpu.vector_store %arg5[%c0_24, %c0_25], %39 {strides = array<i32>} : memref<8x1xf32, #tpu.memory_space<vmem>>, vector<8x1xf32>,
      %cst_26 = arith.constant 0.000000e+00 : f32
      %41 = vector.broadcast %cst_26 : f32 to vector<8x1xf32>
      %c0_27 = arith.constant 0 : index
      %c0_28 = arith.constant 0 : index
      %42 = vector.load %arg6[%c0_27, %c0_28] : memref<8x1xf32, #tpu.memory_space<vmem>>, vector<8x1xf32>
      tpu.vector_store %arg6[%c0_27, %c0_28], %41 {strides = array<i32>} : memref<8x1xf32, #tpu.memory_space<vmem>>, vector<8x1xf32>,
      %cst_29 = arith.constant 0.000000e+00 : f32
      %43 = vector.broadcast %cst_29 : f32 to vector<8x1xf32>
      %c0_30 = arith.constant 0 : index
      %c0_31 = arith.constant 0 : index
      %44 = vector.load %arg7[%c0_30, %c0_31] : memref<8x1xf32, #tpu.memory_space<vmem>>, vector<8x1xf32>
      tpu.vector_store %arg7[%c0_30, %c0_31], %43 {strides = array<i32>} : memref<8x1xf32, #tpu.memory_space<vmem>>, vector<8x1xf32>,
    } else {
    }
    %c0 = arith.constant 0 : index
    %c0_1 = arith.constant 0 : index
    %3 = vector.load %arg2[%c0, %c0_1] : memref<8x32xf32, #tpu.memory_space<vmem>>, vector<8x32xf32>
    %c0_2 = arith.constant 0 : index
    %c0_3 = arith.constant 0 : index
    %4 = vector.load %arg3[%c0_2, %c0_3] : memref<8x1xi32, #tpu.memory_space<vmem>>, vector<8x1xi32>
    %c32_i32 = arith.constant 32 : i32
    %5 = arith.muli %arg1, %c32_i32 : i32
    %6 = tpu.iota {dimensions = array<i32: 1>} : vector<1x32xi32>
    %7 = vector.broadcast %5 : i32 to vector<1x32xi32>
    %8 = arith.addi %7, %6 : vector<1x32xi32>
    %cst = arith.constant dense<0xFF800000> : vector<8xf32>
    %9 = vector.multi_reduction <maximumf>, %3, %cst [1] : vector<8x32xf32> to vector<8xf32>
    %10 = vector.shape_cast %9 : vector<8xf32> to vector<8x1xf32>
    %c0_4 = arith.constant 0 : index
    %c0_5 = arith.constant 0 : index
    %11 = vector.load %arg5[%c0_4, %c0_5] : memref<8x1xf32, #tpu.memory_space<vmem>>, vector<8x1xf32>
    %12 = arith.maximumf %11, %10 : vector<8x1xf32>
    %c0_6 = arith.constant 0 : index
    %c0_7 = arith.constant 0 : index
    %13 = vector.load %arg5[%c0_6, %c0_7] : memref<8x1xf32, #tpu.memory_space<vmem>>, vector<8x1xf32>
    %14 = arith.subf %13, %12 : vector<8x1xf32>
    %15 = math.exp %14 : vector<8x1xf32>
    %16 = vector.broadcast %12 : vector<8x1xf32> to vector<8x32xf32>
    %17 = arith.subf %3, %16 : vector<8x32xf32>
    %18 = math.exp %17 : vector<8x32xf32>
    %c0_8 = arith.constant 0 : index
    %c0_9 = arith.constant 0 : index
    %19 = vector.load %arg6[%c0_8, %c0_9] : memref<8x1xf32, #tpu.memory_space<vmem>>, vector<8x1xf32>
    %20 = arith.mulf %19, %15 : vector<8x1xf32>
    %cst_10 = arith.constant dense<0.000000e+00> : vector<8xf32>
    %21 = vector.multi_reduction <add>, %18, %cst_10 [1] : vector<8x32xf32> to vector<8xf32>
    %22 = vector.shape_cast %21 : vector<8xf32> to vector<8x1xf32>
    %23 = arith.addf %20, %22 : vector<8x1xf32>
    %c0_11 = arith.constant 0 : index
    %c0_12 = arith.constant 0 : index
    %24 = vector.load %arg6[%c0_11, %c0_12] : memref<8x1xf32, #tpu.memory_space<vmem>>, vector<8x1xf32>
    tpu.vector_store %arg6[%c0_11, %c0_12], %23 {strides = array<i32>} : memref<8x1xf32, #tpu.memory_space<vmem>>, vector<8x1xf32>,
    %c0_13 = arith.constant 0 : index
    %c0_14 = arith.constant 0 : index
    %25 = vector.load %arg5[%c0_13, %c0_14] : memref<8x1xf32, #tpu.memory_space<vmem>>, vector<8x1xf32>
    tpu.vector_store %arg5[%c0_13, %c0_14], %12 {strides = array<i32>} : memref<8x1xf32, #tpu.memory_space<vmem>>, vector<8x1xf32>,
    %26 = vector.broadcast %8 : vector<1x32xi32> to vector<8x32xi32>
    %27 = vector.broadcast %4 : vector<8x1xi32> to vector<8x32xi32>
    %28 = arith.cmpi eq, %26, %27 : vector<8x32xi32>
    %c0_15 = arith.constant 0 : index
    %c0_16 = arith.constant 0 : index
    %29 = vector.load %arg7[%c0_15, %c0_16] : memref<8x1xf32, #tpu.memory_space<vmem>>, vector<8x1xf32>
    %cst_17 = arith.constant 0.000000e+00 : f32
    %30 = vector.broadcast %cst_17 : f32 to vector<8x32xf32>
    %31 = arith.select %28, %3, %30 : vector<8x32xi1>, vector<8x32xf32>
    %cst_18 = arith.constant dense<0.000000e+00> : vector<8xf32>
    %32 = vector.multi_reduction <add>, %31, %cst_18 [1] : vector<8x32xf32> to vector<8xf32>
    %33 = vector.shape_cast %32 : vector<8xf32> to vector<8x1xf32>
    %34 = arith.addf %29, %33 : vector<8x1xf32>
    %c0_19 = arith.constant 0 : index
    %c0_20 = arith.constant 0 : index
    %35 = vector.load %arg7[%c0_19, %c0_20] : memref<8x1xf32, #tpu.memory_space<vmem>>, vector<8x1xf32>
    tpu.vector_store %arg7[%c0_19, %c0_20], %34 {strides = array<i32>} : memref<8x1xf32, #tpu.memory_space<vmem>>, vector<8x1xf32>,
    %c0_i32_21 = arith.constant 0 : i32
    %36 = arith.cmpi eq, %arg1, %c0_i32_21 : i32
    %37 = arith.extui %36 : i1 to i32
    %c0_i32_22 = arith.constant 0 : i32
    %38 = arith.cmpi ne, %37, %c0_i32_22 : i32
    scf.if %38 {
      %c0_23 = arith.constant 0 : index
      %c0_24 = arith.constant 0 : index
      %39 = vector.load %arg5[%c0_23, %c0_24] : memref<8x1xf32, #tpu.memory_space<vmem>>, vector<8x1xf32>
      %c0_25 = arith.constant 0 : index
      %c0_26 = arith.constant 0 : index
      %40 = vector.load %arg6[%c0_25, %c0_26] : memref<8x1xf32, #tpu.memory_space<vmem>>, vector<8x1xf32>
      %41 = math.log %40 : vector<8x1xf32>
      %42 = arith.addf %39, %41 : vector<8x1xf32>
      %c0_27 = arith.constant 0 : index
      %c0_28 = arith.constant 0 : index
      %43 = vector.load %arg7[%c0_27, %c0_28] : memref<8x1xf32, #tpu.memory_space<vmem>>, vector<8x1xf32>
      %44 = arith.subf %42, %43 : vector<8x1xf32>
      %45 = vector.shape_cast %44 : vector<8x1xf32> to vector<1x8x1xf32>
      %cst_29 = arith.constant dense<0.000000e+00> : vector<1xf32>
      %46 = vector.multi_reduction <add>, %45, %cst_29 [1, 2] : vector<1x8x1xf32> to vector<1xf32>
      %47 = vector.shape_cast %46 : vector<1xf32> to vector<1x1x1xf32>
      %48 = vector.extract %47[0, 0, 0] : f32 from vector<1x1x1xf32>
      %49 = vector.broadcast %48 : f32 to vector<1x8x128xf32>
      %c0_30 = arith.constant 0 : index
      %c0_31 = arith.constant 0 : index
      %c0_32 = arith.constant 0 : index
      %50 = vector.load %arg4[%c0_30, %c0_31, %c0_32] : memref<1x8x128xf32, #tpu.memory_space<vmem>>, vector<1x8x128xf32>
      tpu.vector_store %arg4[%c0_30, %c0_31, %c0_32], %49 {strides = array<i32>} : memref<1x8x128xf32, #tpu.memory_space<vmem>>, vector<1x8x128xf32>,
    } else {
    }
    return
  }
  func.func @transform_0(%arg0: i32, %arg1: i32) -> (i32, i32) {
    %c0_i32 = arith.constant 0 : i32
    return %arg0, %arg1 : i32, i32
  }
  func.func @transform_1(%arg0: i32, %arg1: i32) -> (i32, i32) {
    %c0_i32 = arith.constant 0 : i32
    %c0_i32_0 = arith.constant 0 : i32
    return %arg0, %c0_i32 : i32, i32
  }
  func.func @transform_2(%arg0: i32, %arg1: i32) -> (i32, i32, i32) {
    %c0_i32 = arith.constant 0 : i32
    %c0_i32_0 = arith.constant 0 : i32
    %c0_i32_1 = arith.constant 0 : i32
    return %arg0, %c0_i32, %c0_i32_0 : i32, i32, i32
  }
}

</mosaic_0001>

<llo_original>
// kernel: tpu_custom_call.1
$region0: #{tpu_custom_call.1}
  #allocation0 [shape = 'u32[]', space=smem, size = 0x4, offset = 0x4, fixed_abs, tag = 'smem constant byte address 0x4 - core index']
  #allocation1 [shape = 'u32[144,128]{1,0:T(1,128)}', space=vmem, size = 0x12000, scoped, tag = 'internal scratch']
  #allocation2 [shape = 'f32[8,1]{1,0:T(8,128)}', space=vmem, size = 0x1000, scoped, tag = 'scratch operand']
  #allocation3 [shape = 'f32[8,1]{1,0:T(8,128)}', space=vmem, size = 0x1000, scoped, tag = 'scratch operand']
  #allocation4 [shape = 'f32[8,1]{1,0:T(8,128)}', space=vmem, size = 0x1000, scoped, tag = 'scratch operand']
  %s0 = inlined_call_operand.vmem [shape: f32[8,32], index: 0, kind: input, shape index: {}]
  %s1 = inlined_call_operand.vmem [shape: s32[8,1], index: 1, kind: input, shape index: {}]
  %s2 = inlined_call_operand.hbm [shape: f32[1,8,128], index: 2, kind: output, shape index: {}]
  %s3 = sld [smem:[#allocation0]]
  $region26: #{tpu_custom_call.1} parent=0
    _
  %s5 = ssub.s32 1, %s3
  %s6 = scalar_select 0, %s5, %s3
  $region1: #{tpu_custom_call.1} parent=0
    #allocation5 [shape = 'u8[4096]{0}', space=vmem, size = 0x1000, scoped, tag = 'output window, operand 0, single buffered']
    #allocation6 [shape = 's32[1]{0}', space=sflag, size = 0x4, scoped, tag = 'scoped memory for tpu_custom_call.1']
    %7 = vsyncpa [#allocation6], 0
    // Predicated region
    $region2: #{tpu_custom_call.1} parent=1 // pred_check
      _
    $region3: #{tpu_custom_call.1} parent=1 // pred_check_branch
      %9 = sbr.rel (0) target = $region5
    $region4: #{tpu_custom_call.1} parent=1 // pred_region
      _
    $region5: #{tpu_custom_call.1} parent=1 // pred_fallthru
      _
    // Predicated region
    $region6: #{tpu_custom_call.1} parent=1 // pred_check
      _
    $region7: #{tpu_custom_call.1} parent=1 // pred_check_branch
      %11 = sbr.rel (0) target = $region9
    $region8: #{tpu_custom_call.1} parent=1 // pred_region
      _
    $region9: #{tpu_custom_call.1} parent=1 // pred_fallthru
      _
    %p12 = scmp.eq.s32.totalorder 0, 0
    // Predicated region
    $region10: #{tpu_custom_call.1} parent=1 // pred_check
      %p13 = pneg %p12
    $region11: #{tpu_custom_call.1} parent=1 // pred_check_branch
      %15 = sbr.rel (%p13) target = $region13
    $region12: #{tpu_custom_call.1} parent=1 // pred_region
      %vm16 = vcmask 7168
      %17 = vst.msk [vmem:[#allocation2] sm:$0xff] %vm16, -inf
      %18 = vst.msk [vmem:[#allocation3] sm:$0xff] %vm16, 0.0
      %19 = vst.msk [vmem:[#allocation4] sm:$0xff] %vm16, 0.0
    $region13: #{tpu_custom_call.1} parent=1 // pred_fallthru
      _
    %v20 = vld [vmem:[%s0] sm:$0xff]
    %v21 = vld [vmem:[%s1] sm:$0xff]
    %s22 = smul.u32 0, 32
    %v23 = vlaneseq
    %v24 = vand.u32 %v23, 127
    %v25 = vstv %s22
    %v26 = vadd.s32 %v25, %v24
    %vm27 = vcmask 261120
    %v28 = vsel %vm27, %v20, -inf
    %29 = vmax.xlane.f32.xlu0 %v28
    %v30 = vpop.xlane.xlu0 %29
    %v31 = vld [vmem:[#allocation2] sm:$0xff]
    %v32 = vmax.f32 %v31, %v30
    %v33 = vsub.f32 %v31, %v32
    %v34 = vmul.f32 %v33, 1.442695
    %v35 = vpow.pop %v34
    %37 = vset.pattern.permute.xlu0 0
    %38 = vperm.xlu0 %37, %v32
    %v39 = vpop.permute.xlu0 %38
    %v41 = vsub.f32 %v20, %v39
    %v42 = vmul.f32 %v41, 1.442695
    %v43 = vpow.pop %v42
    %v44 = vld [vmem:[#allocation3] sm:$0xff]
    %v45 = vmul.f32 %v44, %v35
    %v46 = vsel %vm27, %v43, 0.0
    %47 = vadd.xlane.f32.xlu0 %v46
    %v48 = vpop.xlane.xlu0 %47
    %v49 = vadd.f32 %v45, %v48
    %vm50 = vcmask 7168
    %51 = vst.msk [vmem:[#allocation3] sm:$0xff] %vm50, %v49
    %52 = vst.msk [vmem:[#allocation2] sm:$0xff] %vm50, %v32
    %53 = vset.pattern.permute.xlu0 0
    %54 = vperm.xlu0 %53, %v21
    %v55 = vpop.permute.xlu0 %54
    %vm56 = vcmp.eq.s32.totalorder %v26, %v55
    %v57 = vld [vmem:[#allocation4] sm:$0xff]
    %v58 = vsel %vm56, %v20, 0.0
    %v59 = vsel %vm27, %v58, 0.0
    %60 = vadd.xlane.f32.xlu0 %v59
    %v61 = vpop.xlane.xlu0 %60
    %v62 = vadd.f32 %v57, %v61
    %63 = vst.msk [vmem:[#allocation4] sm:$0xff] %vm50, %v62
    // Predicated region
    $region14: #{tpu_custom_call.1} parent=1 // pred_check
      %p64 = pneg %p12
    $region15: #{tpu_custom_call.1} parent=1 // pred_check_branch
      %66 = sbr.rel (%p64) target = $region17
    $region16: #{tpu_custom_call.1} parent=1 // pred_region
      %v67 = vld [vmem:[#allocation2] sm:$0xff]
      %v68 = vld [vmem:[#allocation3] sm:$0xff]
      %v69 = vlog2.pop %v68
      %v70 = vmul.f32 %v69, 0.6931472
      %v71 = vadd.f32 %v67, %v70
      %v72 = vld [vmem:[#allocation4] sm:$0xff]
      %v73 = vsub.f32 %v71, %v72
      %v74 = vsel %vm50, %v73, 0.0
      %75 = vadd.xlane.f32.xlu0 %v74
      %v76 = vpop.xlane.xlu0 %75
      %v77 = vrot.slane %v76, 4
      %v78 = vadd.f32 %v76, %v77
      %v79 = vrot.slane %v78, 2
      %v80 = vadd.f32 %v78, %v79
      %v81 = vrot.slane %v80, 1
      %v82 = vadd.f32 %v80, %v81
      %s83 = vtos %v82
      %v84 = vstv %s83
      %85 = vst [vmem:[#allocation5] sm:$0xff] %v84
    $region17: #{tpu_custom_call.1} parent=1 // pred_fallthru
      _
    // Predicated region
    $region18: #{tpu_custom_call.1} parent=1 // pred_check
      _
    $region19: #{tpu_custom_call.1} parent=1 // pred_check_branch
      %87 = sbr.rel (0) target = $region21
    $region20: #{tpu_custom_call.1} parent=1 // pred_region
      %s89 = ssub.s32 128, 128
      %90 = vsyncadd [#allocation6], %s89
      %s92 = sshll.u32 [#allocation5], 4
      %s93 = int_to_ptr.vmem [resolvable:$true] %s92
      %95 = dma.vmem_to_hbm [thread:$0]  %s93, 128, %s2, [#allocation6]
    $region21: #{tpu_custom_call.1} parent=1 // pred_fallthru
      _
    // Predicated region
    $region22: #{tpu_custom_call.1} parent=1 // pred_check
      _
    $region23: #{tpu_custom_call.1} parent=1 // pred_check_branch
      %97 = sbr.rel (0) target = $region25
    $region24: #{tpu_custom_call.1} parent=1 // pred_region
      %98 = dma.done [#allocation6], 128
    $region25: #{tpu_custom_call.1} parent=1 // pred_fallthru
      _
    %99 = vsyncpa [#allocation6], 1

</llo_original>
